<compile_context>
chip_gen: v7x
topology: tpu7x:2x2x1
jax: 0.10.0
libtpu: 0.0.40
codegen_flags: <defaults>
</compile_context>

<pallas_src>
import functools

import jax
import jax.numpy as jnp
from jax import lax
from jax.experimental import pallas as pl
from jax.experimental.pallas import tpu as pltpu


def _align_loss_kernel(emb_ref, lab_ref, loss_ref, s_acc, n_acc, sq_acc, *,
                       n_rows: int):
    """Row-tiled accumulation of per-cluster sums, counts and sum_i ||e_i||^2."""
    i = pl.program_id(0)

    @pl.when(i == 0)
    def _init():
        s_acc[...] = jnp.zeros_like(s_acc)
        n_acc[...] = jnp.zeros_like(n_acc)
        sq_acc[...] = jnp.zeros_like(sq_acc)

    tm = emb_ref.shape[0]          # rows in this tile (static)
    K = s_acc.shape[0]             # number of clusters (static)

    e = emb_ref[...]               # (tm, D) -- keep native dtype for the MXU
    lab = lab_ref[...]             # (1, tm) int32 cluster labels

    # One-hot^T laid out (K, tm) directly, so the contraction below is a
    # vanilla matmul (no transpose / XLU relayout of e or the one-hot).
    kk = lax.broadcasted_iota(jnp.int32, (K, tm), 0)       # (K, tm)
    hit = lab == kk                                        # (K, tm) bool

    if n_rows % tm != 0:
        # Last tile extends past N: mask out-of-range rows (their VMEM content
        # is undefined and must not reach the MXU or the reductions).
        col = lax.broadcasted_iota(jnp.int32, (1, tm), 1) + i * tm
        hit = hit & (col < n_rows)
        rows = lax.broadcasted_iota(jnp.int32, (tm, 1), 0) + i * tm
        e = jnp.where(rows < n_rows, e, jnp.zeros_like(e))

    # Per-cluster sums: (K, tm) @ (tm, D) -> (K, D) with f32 accumulation.
    # Native-dtype operands (bf16 in -> bf16 MXU mode; one-hot is exactly 0/1).
    s_acc[...] += jnp.dot(hit.astype(e.dtype), e,
                          preferred_element_type=jnp.float32)

    # Per-cluster element counts -- exact integer arithmetic.
    n_acc[...] += jnp.sum(hit.astype(jnp.int32), axis=1, keepdims=True)

    # sum_i ||e_i||^2 for this tile (replaces the eye() mask on the Gram).
    ef = e.astype(jnp.float32)
    sq_acc[...] += jnp.sum(ef * ef)

    @pl.when(i == pl.num_programs(0) - 1)
    def _finalize():
        s = s_acc[...]                                     # (K, D) f32
        total = jnp.sum(s * s) - sq_acc[...]               # (1, 1) f32
        n = n_acc[...]                                     # (K, 1) int32
        count = jnp.sum(n * n) - n_rows                    # int32, exact
        # count == 0 (all clusters singletons) -> non-finite result, matching
        # torch.mean over an empty selection.
        loss_ref[...] = total / count.astype(jnp.float32)


def align_loss(embedding, cluster_out, *, block_rows: int = 512):
    """Pallas TPU implementation of AlignLoss.forward(embedding, cluster_out)."""
    N, D = embedding.shape
    K = cluster_out.shape[-1]

    # argmax hoisted out of the kernel (K is tiny; the in-kernel argmax wasted
    # ~97% of each vreg's lanes).  jnp.argmax uses first-occurrence tie-break,
    # matching torch.max(dim=-1)[1].
    labels = jnp.argmax(cluster_out, axis=-1).astype(jnp.int32).reshape(1, N)

    if N <= block_rows:
        tm = N                      # single tile; full-dim block, any N allowed
    else:
        tm = block_rows
        # lane constraint for the (1, tm) label blocks / sublane for emb blocks
        assert tm % 128 == 0, "block_rows must be a multiple of 128 when tiling"

    grid = (pl.cdiv(N, tm),)
    kernel = functools.partial(_align_loss_kernel, n_rows=N)

    out = pl.pallas_call(
        kernel,
        out_shape=jax.ShapeDtypeStruct((1, 1), jnp.float32),
        grid=grid,
        in_specs=[
            pl.BlockSpec((tm, D), lambda i: (i, 0)),   # embedding row tile
            pl.BlockSpec((1, tm), lambda i: (0, i)),   # label tile
        ],
        out_specs=pl.BlockSpec((1, 1), lambda i: (0, 0)),
        scratch_shapes=[
            pltpu.VMEM((K, D), jnp.float32),   # per-cluster embedding sums
            pltpu.VMEM((K, 1), jnp.int32),     # per-cluster element counts
            pltpu.VMEM((1, 1), jnp.float32),   # running sum_i ||e_i||^2
        ],
        compiler_params=pltpu.CompilerParams(
            dimension_semantics=("arbitrary",)),   # accumulation axis
    )(embedding, labels)
    return out[0, 0]


def _align_loss_ref(embedding, cluster_out):
    # pure-JAX reference mirroring the PyTorch module exactly
    lab = jnp.argmax(cluster_out, axis=-1)
    same = lab[:, None] == lab[None, :]
    off_diag = ~jnp.eye(embedding.shape[0], dtype=bool)
    mask = same & off_diag
    e = embedding.astype(jnp.float32)
    gram = e @ e.T
    return jnp.sum(jnp.where(mask, gram, 0.0)) / jnp.sum(mask.astype(jnp.float32))


if __name__ == "__main__":
    key = jax.random.PRNGKey(0)

    # Test 1: small single-tile case (N > K guarantees at least one same pair).
    k1, k2 = jax.random.split(key)
    N, D, K = 8, 32, 4
    embedding = jax.random.normal(k1, (N, D), dtype=jnp.float32)
    cluster_out = jax.random.normal(k2, (N, K), dtype=jnp.float32)
    loss = jax.block_until_ready(align_loss(embedding, cluster_out))
    ref = _align_loss_ref(embedding, cluster_out)
    assert jnp.allclose(loss, ref, rtol=1e-4, atol=1e-5), (loss, ref)

    # Test 2: multi-tile path with a padded last tile (exercises row masking
    # and the cross-tile scratch accumulators).
    k3, k4 = jax.random.split(k1)
    N2, D2, K2 = 200, 64, 4
    embedding2 = jax.random.normal(k3, (N2, D2), dtype=jnp.float32)
    cluster_out2 = jax.random.normal(k4, (N2, K2), dtype=jnp.float32)
    loss2 = jax.block_until_ready(
        align_loss(embedding2, cluster_out2, block_rows=128))
    ref2 = _align_loss_ref(embedding2, cluster_out2)
    assert jnp.allclose(loss2, ref2, rtol=1e-4, atol=1e-5), (loss2, ref2)

    print("KERNEL_OK")
</pallas_src>

<mosaic_0001>
module attributes {stable_mosaic.version = 11 : i64} {
  func.func @_align_loss_kernel(%arg0: i32, %arg1: memref<8x32xf32, #tpu.memory_space<vmem>>, %arg2: memref<1x8xi32, #tpu.memory_space<vmem>>, %arg3: memref<1x1xf32, #tpu.memory_space<vmem>>, %arg4: memref<4x32xf32, #tpu.memory_space<vmem>>, %arg5: memref<4x1xi32, #tpu.memory_space<vmem>>, %arg6: memref<1x1xf32, #tpu.memory_space<vmem>>) attributes {dimension_semantics = [#tpu.dimension_semantics<arbitrary>], iteration_bounds = array<i64: 1>, scalar_prefetch = 0 : i64, scratch_operands = 3 : i64, tpu.core_type = #tpu.core_type<tc>, window_params = [{transform_indices = @transform_0, window_bounds = array<i64: 8, 32>}, {transform_indices = @transform_1, window_bounds = array<i64: 1, 8>}, {pipeline_mode = #tpu.pipeline_mode<synchronous>, transform_indices = @transform_2, window_bounds = array<i64: 1, 1>}]} {
    %c0_i32 = arith.constant 0 : i32
    %0 = arith.cmpi eq, %arg0, %c0_i32 : i32
    %1 = arith.extui %0 : i1 to i32
    %c0_i32_0 = arith.constant 0 : i32
    %2 = arith.cmpi ne, %1, %c0_i32_0 : i32
    scf.if %2 {
      %cst_20 = arith.constant 0.000000e+00 : f32
      %32 = vector.broadcast %cst_20 : f32 to vector<4x32xf32>
      %c0_21 = arith.constant 0 : index
      %c0_22 = arith.constant 0 : index
      %33 = vector.load %arg4[%c0_21, %c0_22] : memref<4x32xf32, #tpu.memory_space<vmem>>, vector<4x32xf32>
      tpu.vector_store %arg4[%c0_21, %c0_22], %32 {strides = array<i32>} : memref<4x32xf32, #tpu.memory_space<vmem>>, vector<4x32xf32>,
      %c0_i32_23 = arith.constant 0 : i32
      %34 = vector.broadcast %c0_i32_23 : i32 to vector<4x1xi32>
      %c0_24 = arith.constant 0 : index
      %c0_25 = arith.constant 0 : index
      %35 = vector.load %arg5[%c0_24, %c0_25] : memref<4x1xi32, #tpu.memory_space<vmem>>, vector<4x1xi32>
      tpu.vector_store %arg5[%c0_24, %c0_25], %34 {strides = array<i32>} : memref<4x1xi32, #tpu.memory_space<vmem>>, vector<4x1xi32>,
      %cst_26 = arith.constant 0.000000e+00 : f32
      %36 = vector.broadcast %cst_26 : f32 to vector<1x1xf32>
      %c0_27 = arith.constant 0 : index
      %c0_28 = arith.constant 0 : index
      %37 = vector.load %arg6[%c0_27, %c0_28] : memref<1x1xf32, #tpu.memory_space<vmem>>, vector<1x1xf32>
      tpu.vector_store %arg6[%c0_27, %c0_28], %36 {strides = array<i32>} : memref<1x1xf32, #tpu.memory_space<vmem>>, vector<1x1xf32>,
    } else {
    }
    %c0 = arith.constant 0 : index
    %c0_1 = arith.constant 0 : index
    %3 = vector.load %arg1[%c0, %c0_1] : memref<8x32xf32, #tpu.memory_space<vmem>>, vector<8x32xf32>
    %c0_2 = arith.constant 0 : index
    %c0_3 = arith.constant 0 : index
    %4 = vector.load %arg2[%c0_2, %c0_3] : memref<1x8xi32, #tpu.memory_space<vmem>>, vector<1x8xi32>
    %5 = tpu.iota {dimensions = array<i32: 0>} : vector<4x8xi32>
    %6 = vector.broadcast %4 : vector<1x8xi32> to vector<4x8xi32>
    %7 = arith.cmpi eq, %6, %5 : vector<4x8xi32>
    %c0_4 = arith.constant 0 : index
    %c0_5 = arith.constant 0 : index
    %8 = vector.load %arg4[%c0_4, %c0_5] : memref<4x32xf32, #tpu.memory_space<vmem>>, vector<4x32xf32>
    %9 = arith.extui %7 : vector<4x8xi1> to vector<4x8xi32>
    %10 = arith.sitofp %9 : vector<4x8xi32> to vector<4x8xf32>
    %cst = arith.constant dense<0.000000e+00> : vector<4x32xf32>
    %11 = tpu.matmul %10, %3, %cst {dimension_numbers = #tpu.dot_dimension_numbers<[1], [0], [0], [1], [0, 0, 1, 1], [], []>} : vector<4x8xf32>, vector<8x32xf32>, vector<4x32xf32> -> vector<4x32xf32>
    %12 = arith.addf %8, %11 : vector<4x32xf32>
    %c0_6 = arith.constant 0 : index
    %c0_7 = arith.constant 0 : index
    %13 = vector.load %arg4[%c0_6, %c0_7] : memref<4x32xf32, #tpu.memory_space<vmem>>, vector<4x32xf32>
    tpu.vector_store %arg4[%c0_6, %c0_7], %12 {strides = array<i32>} : memref<4x32xf32, #tpu.memory_space<vmem>>, vector<4x32xf32>,
    %c0_8 = arith.constant 0 : index
    %c0_9 = arith.constant 0 : index
    %14 = vector.load %arg5[%c0_8, %c0_9] : memref<4x1xi32, #tpu.memory_space<vmem>>, vector<4x1xi32>
    %15 = arith.extui %7 : vector<4x8xi1> to vector<4x8xi32>
    %cst_10 = arith.constant dense<0> : vector<4xi32>
    %16 = vector.multi_reduction <add>, %15, %cst_10 [1] : vector<4x8xi32> to vector<4xi32>
    %17 = vector.shape_cast %16 : vector<4xi32> to vector<4x1xi32>
    %18 = arith.addi %14, %17 : vector<4x1xi32>
    %c0_11 = arith.constant 0 : index
    %c0_12 = arith.constant 0 : index
    %19 = vector.load %arg5[%c0_11, %c0_12] : memref<4x1xi32, #tpu.memory_space<vmem>>, vector<4x1xi32>
    tpu.vector_store %arg5[%c0_11, %c0_12], %18 {strides = array<i32>} : memref<4x1xi32, #tpu.memory_space<vmem>>, vector<4x1xi32>,
    %c0_13 = arith.constant 0 : index
    %c0_14 = arith.constant 0 : index
    %20 = vector.load %arg6[%c0_13, %c0_14] : memref<1x1xf32, #tpu.memory_space<vmem>>, vector<1x1xf32>
    %21 = arith.mulf %3, %3 : vector<8x32xf32>
    %22 = vector.shape_cast %21 : vector<8x32xf32> to vector<1x8x32xf32>
    %cst_15 = arith.constant dense<0.000000e+00> : vector<1xf32>
    %23 = vector.multi_reduction <add>, %22, %cst_15 [1, 2] : vector<1x8x32xf32> to vector<1xf32>
    %24 = vector.shape_cast %23 : vector<1xf32> to vector<1x1x1xf32>
    %25 = vector.extract %24[0, 0, 0] : f32 from vector<1x1x1xf32>
    %26 = vector.broadcast %25 : f32 to vector<1x1xf32>
    %27 = arith.addf %20, %26 : vector<1x1xf32>
    %c0_16 = arith.constant 0 : index
    %c0_17 = arith.constant 0 : index
    %28 = vector.load %arg6[%c0_16, %c0_17] : memref<1x1xf32, #tpu.memory_space<vmem>>, vector<1x1xf32>
    tpu.vector_store %arg6[%c0_16, %c0_17], %27 {strides = array<i32>} : memref<1x1xf32, #tpu.memory_space<vmem>>, vector<1x1xf32>,
    %c0_i32_18 = arith.constant 0 : i32
    %29 = arith.cmpi eq, %arg0, %c0_i32_18 : i32
    %30 = arith.extui %29 : i1 to i32
    %c0_i32_19 = arith.constant 0 : i32
    %31 = arith.cmpi ne, %30, %c0_i32_19 : i32
    scf.if %31 {
      %c0_20 = arith.constant 0 : index
      %c0_21 = arith.constant 0 : index
      %32 = vector.load %arg4[%c0_20, %c0_21] : memref<4x32xf32, #tpu.memory_space<vmem>>, vector<4x32xf32>
      %33 = arith.mulf %32, %32 : vector<4x32xf32>
      %34 = vector.shape_cast %33 : vector<4x32xf32> to vector<1x4x32xf32>
      %cst_22 = arith.constant dense<0.000000e+00> : vector<1xf32>
      %35 = vector.multi_reduction <add>, %34, %cst_22 [1, 2] : vector<1x4x32xf32> to vector<1xf32>
      %36 = vector.shape_cast %35 : vector<1xf32> to vector<1x1x1xf32>
      %37 = vector.extract %36[0, 0, 0] : f32 from vector<1x1x1xf32>
      %c0_23 = arith.constant 0 : index
      %c0_24 = arith.constant 0 : index
      %38 = vector.load %arg6[%c0_23, %c0_24] : memref<1x1xf32, #tpu.memory_space<vmem>>, vector<1x1xf32>
      %39 = vector.broadcast %37 : f32 to vector<1x1xf32>
      %40 = arith.subf %39, %38 : vector<1x1xf32>
      %c0_25 = arith.constant 0 : index
      %c0_26 = arith.constant 0 : index
      %41 = vector.load %arg5[%c0_25, %c0_26] : memref<4x1xi32, #tpu.memory_space<vmem>>, vector<4x1xi32>
      %42 = arith.muli %41, %41 : vector<4x1xi32>
      %43 = vector.shape_cast %42 : vector<4x1xi32> to vector<1x4x1xi32>
      %cst_27 = arith.constant dense<0> : vector<1xi32>
      %44 = vector.multi_reduction <add>, %43, %cst_27 [1, 2] : vector<1x4x1xi32> to vector<1xi32>
      %45 = vector.shape_cast %44 : vector<1xi32> to vector<1x1x1xi32>
      %46 = vector.extract %45[0, 0, 0] : i32 from vector<1x1x1xi32>
      %c8_i32 = arith.constant 8 : i32
      %47 = arith.subi %46, %c8_i32 : i32
      %48 = arith.sitofp %47 : i32 to f32
      %49 = vector.broadcast %48 : f32 to vector<1x1xf32>
      %50 = arith.divf %40, %49 : vector<1x1xf32>
      %c0_28 = arith.constant 0 : index
      %c0_29 = arith.constant 0 : index
      %51 = vector.load %arg3[%c0_28, %c0_29] : memref<1x1xf32, #tpu.memory_space<vmem>>, vector<1x1xf32>
      tpu.vector_store %arg3[%c0_28, %c0_29], %50 {strides = array<i32>} : memref<1x1xf32, #tpu.memory_space<vmem>>, vector<1x1xf32>,
    } else {
    }
    return
  }
  func.func @transform_0(%arg0: i32) -> (i32, i32) {
    %c0_i32 = arith.constant 0 : i32
    %c0_i32_0 = arith.constant 0 : i32
    return %arg0, %c0_i32 : i32, i32
  }
  func.func @transform_1(%arg0: i32) -> (i32, i32) {
    %c0_i32 = arith.constant 0 : i32
    %c0_i32_0 = arith.constant 0 : i32
    return %c0_i32, %arg0 : i32, i32
  }
  func.func @transform_2(%arg0: i32) -> (i32, i32) {
    %c0_i32 = arith.constant 0 : i32
    %c0_i32_0 = arith.constant 0 : i32
    %c0_i32_1 = arith.constant 0 : i32
    return %c0_i32, %c0_i32_0 : i32, i32
  }
}

</mosaic_0001>

<llo_original>
// kernel: tpu_custom_call.1
$region0: #{tpu_custom_call.1}
  #allocation0 [shape = 'u32[]', space=smem, size = 0x4, offset = 0x4, fixed_abs, tag = 'smem constant byte address 0x4 - core index']
  #allocation1 [shape = 'u32[144,128]{1,0:T(1,128)}', space=vmem, size = 0x12000, scoped, tag = 'internal scratch']
  #allocation2 [shape = 'f32[4,32]{1,0:T(4,128)}', space=vmem, size = 0x800, scoped, tag = 'scratch operand']
  #allocation3 [shape = 's32[4,1]{1,0:T(4,128)}', space=vmem, size = 0x800, scoped, tag = 'scratch operand']
  #allocation4 [shape = 'f32[1,1]{1,0:T(1,128)}', space=vmem, size = 0x200, scoped, tag = 'scratch operand']
  %s0 = inlined_call_operand.hbm [shape: f32[8,32], index: 0, kind: input, shape index: {}]
  %s1 = inlined_call_operand.vmem [shape: s32[1,8], index: 1, kind: input, shape index: {}]
  %s2 = inlined_call_operand.hbm [shape: f32[1,1], index: 2, kind: output, shape index: {}]
  %s3 = sld [smem:[#allocation0]]
  $region30: #{tpu_custom_call.1} parent=0
    _
  %s5 = ssub.s32 1, %s3
  %s6 = scalar_select 0, %s5, %s3
  $region1: #{tpu_custom_call.1} parent=0
    #allocation5 [shape = 'u8[4096]{0}', space=vmem, size = 0x1000, scoped, tag = 'input window, operand 0, single buffered']
    #allocation6 [shape = 's32[1]{0}', space=sflag, size = 0x4, scoped, tag = 'scoped memory for tpu_custom_call.1']
    #allocation7 [shape = 's32[1]{0}', space=sflag, size = 0x4, scoped, tag = 'scoped memory for tpu_custom_call.1']
    #allocation8 [shape = 'u8[512]{0}', space=vmem, size = 0x400, scoped, tag = 'output window, operand 0, single buffered']
    %7 = vsyncpa [#allocation6], 0
    %8 = vsyncpa [#allocation7], 0
    // Predicated region
    $region2: #{tpu_custom_call.1} parent=1 // pred_check
      _
    $region3: #{tpu_custom_call.1} parent=1 // pred_check_branch
      %10 = sbr.rel (0) target = $region5
    $region4: #{tpu_custom_call.1} parent=1 // pred_region
      %s12 = ssub.s32 128, 128
      %13 = vsyncadd [#allocation6], %s12
      %s15 = sshll.u32 [#allocation5], 4
      %s16 = int_to_ptr.vmem [resolvable:$true] %s15
      %18 = dma.hbm_to_vmem [thread:$0]  %s0, 128, %s16, [#allocation6]
    $region5: #{tpu_custom_call.1} parent=1 // pred_fallthru
      _
    // Predicated region
    $region6: #{tpu_custom_call.1} parent=1 // pred_check
      _
    $region7: #{tpu_custom_call.1} parent=1 // pred_check_branch
      %20 = sbr.rel (0) target = $region9
    $region8: #{tpu_custom_call.1} parent=1 // pred_region
      _
    $region9: #{tpu_custom_call.1} parent=1 // pred_fallthru
      _
    // Predicated region
    $region10: #{tpu_custom_call.1} parent=1 // pred_check
      _
    $region11: #{tpu_custom_call.1} parent=1 // pred_check_branch
      %22 = sbr.rel (0) target = $region13
    $region12: #{tpu_custom_call.1} parent=1 // pred_region
      %23 = dma.done [#allocation6], 128
    $region13: #{tpu_custom_call.1} parent=1 // pred_fallthru
      _
    %p24 = scmp.eq.s32.totalorder 0, 0
    // Predicated region
    $region14: #{tpu_custom_call.1} parent=1 // pred_check
      %p25 = pneg %p24
    $region15: #{tpu_custom_call.1} parent=1 // pred_check_branch
      %27 = sbr.rel (%p25) target = $region17
    $region16: #{tpu_custom_call.1} parent=1 // pred_region
      %vm28 = vcmask 257024
      %29 = vst.msk [vmem:[#allocation2] sm:$0xf] %vm28, 0.0
      %vm30 = vcmask 3072
      %31 = vst.msk [vmem:[#allocation3] sm:$0xf] %vm30, 0
      %vm32 = vcmask 0
      %33 = vst.msk [vmem:[#allocation4] sm:$0x1] %vm32, 0.0
    $region17: #{tpu_custom_call.1} parent=1 // pred_fallthru
      _
    %v34 = vld [vmem:[#allocation5] sm:$0xff]
    %v35 = vld [vmem:[%s1] sm:$0x1]
    %v36 = vlaneseq
    %v37 = vshrl.u32 %v36, 7
    %v38 = vlaneseq
    %v39 = vshrl.u32 %v38, 7
    %v40 = vsub.s32 0, %v39
    %v41 = vrot.slane %v35, %v40
    %vm42 = vcmp.eq.s32.totalorder %v41, %v37
    %v43 = vld [vmem:[#allocation2] sm:$0xf]
    %v44 = vsel %vm42, 1, 0
    %v45 = vcvt.s32.f32 %v44
    %vm46 = vcmask 64512
    %v48 = vsel %vm46, %v45, 0
    %50 = vmatprep.subr.mxu0 0.0
    %51 = vmatpush1.msra.mxu0 %v34
    %52 = vmatprep.subr.mxu0 0.0
    %53 = vmatpush1.msra.mxu0 0.0
    %54 = vmatprep.subr.mxu0 0.0
    %55 = vmatpush1.msra.mxu0 0.0
    %56 = vmatprep.subr.mxu0 0.0
    %57 = vmatpush1.msra.mxu0 0.0
    %58 = vmatprep.subr.mxu0 0.0
    %59 = vmatpush1.msra.mxu0 0.0
    %60 = vmatprep.subr.mxu0 0.0
    %61 = vmatpush1.msra.mxu0 0.0
    %62 = vmatprep.subr.mxu0 0.0
    %63 = vmatpush1.msra.mxu0 0.0
    %64 = vmatprep.subr.mxu0 0.0
    %65 = vmatpush1.msra.mxu0 0.0
    %66 = vmatprep.subr.mxu0 0.0
    %67 = vmatpush1.msra.mxu0 0.0
    %68 = vmatprep.subr.mxu0 0.0
    %69 = vmatpush1.msra.mxu0 0.0
    %70 = vmatprep.subr.mxu0 0.0
    %71 = vmatpush1.msra.mxu0 0.0
    %72 = vmatprep.subr.mxu0 0.0
    %73 = vmatpush1.msra.mxu0 0.0
    %74 = vmatprep.subr.mxu0 0.0
    %75 = vmatpush1.msra.mxu0 0.0
    %76 = vmatprep.subr.mxu0 0.0
    %77 = vmatpush1.msra.mxu0 0.0
    %78 = vmatprep.subr.mxu0 0.0
    %79 = vmatpush1.msra.mxu0 0.0
    %80 = vmatprep.subr.mxu0 0.0
    %81 = vmatpush1.msra.mxu0 0.0
    %82 = vmatprep.subr.mxu0 0.0
    %83 = vmatpush1.msra.mxu0 0.0
    %84 = vmatprep.subr.mxu0 0.0
    %85 = vmatpush1.msra.mxu0 0.0
    %86 = vmatprep.subr.mxu0 0.0
    %87 = vmatpush1.msra.mxu0 0.0
    %88 = vmatprep.subr.mxu0 0.0
    %89 = vmatpush1.msra.mxu0 0.0
    %90 = vmatprep.subr.mxu0 0.0
    %91 = vmatpush1.msra.mxu0 0.0
    %92 = vmatprep.subr.mxu0 0.0
    %93 = vmatpush1.msra.mxu0 0.0
    %94 = vmatprep.subr.mxu0 0.0
    %95 = vmatpush1.msra.mxu0 0.0
    %96 = vmatprep.subr.mxu0 0.0
    %97 = vmatpush1.msra.mxu0 0.0
    %98 = vmatprep.subr.mxu0 0.0
    %99 = vmatpush1.msra.mxu0 0.0
    %100 = vmatprep.subr.mxu0 0.0
    %101 = vmatpush1.msra.mxu0 0.0
    %102 = vmatprep.subr.mxu0 0.0
    %103 = vmatpush1.msra.mxu0 0.0
    %104 = vmatprep.subr.mxu0 0.0
    %105 = vmatpush1.msra.mxu0 0.0
    %106 = vmatprep.subr.mxu0 0.0
    %107 = vmatpush1.msra.mxu0 0.0
    %108 = vmatprep.subr.mxu0 0.0
    %109 = vmatpush1.msra.mxu0 0.0
    %110 = vmatprep.subr.mxu0 0.0
    %111 = vmatpush1.msra.mxu0 0.0
    %112 = vmatprep.subr.mxu0 0.0
    %113 = vmatpush1.msra.mxu0 0.0
    %114 = vmatprep.mubr.f32.mxu0 0.0
    %115 = vmatmul.mubr.f32.gmra.mrb[0].mxu0 %v48
    %v116 = vpop.f32.mrb[0].mxu0
    %v117 = vadd.f32 0.0, %v116
    %v118 = vpop.f32.mrb[0].mxu0
    %119 = vdwg.mxu0
    %v120 = vadd.f32 %v43, %v117
    %vm121 = vcmask 257024
    %122 = vst.msk [vmem:[#allocation2] sm:$0xf] %vm121, %v120
    %v123 = vld [vmem:[#allocation3] sm:$0xf]
    %vm124 = vcmask 60416
    %v125 = vsel %vm124, %v44, 0
    %v126 = vand.u32 %v125, 65535
    %v127 = vshrl.u32 %v125, 16
    %v128 = vcvt.s32.f32 %v126
    %v129 = vcvt.s32.f32 %v127
    %130 = vadd.xlane.f32.xlu0 %v128
    %v131 = vpop.xlane.xlu0 %130
    %132 = vadd.xlane.f32.xlu0 %v129
    %v133 = vpop.xlane.xlu0 %132
    %v134 = vcvt.f32.s32 %v131
    %v135 = vcvt.f32.s32 %v133
    %v136 = vshll.u32 %v135, 16
    %v137 = vadd.s32 %v136, %v134
    %v138 = vadd.s32 %v123, %v137
    %vm139 = vcmask 3072
    %140 = vst.msk [vmem:[#allocation3] sm:$0xf] %vm139, %v138
    %v141 = vld [vmem:[#allocation4] sm:$0x1]
    %v142 = vmul.f32 %v34, %v34
    %vm143 = vcmask 261120
    %v144 = vsel %vm143, %v142, 0.0
    %145 = vadd.xlane.f32.xlu0 %v144
    %v146 = vpop.xlane.xlu0 %145
    %v147 = vrot.slane %v146, 4
    %v148 = vadd.f32 %v146, %v147
    %v149 = vrot.slane %v148, 2
    %v150 = vadd.f32 %v148, %v149
    %v151 = vrot.slane %v150, 1
    %v152 = vadd.f32 %v150, %v151
    %s153 = vtos %v152
    %v154 = vstv %s153
    %v155 = vadd.f32 %v141, %v154
    %vm156 = vcmask 0
    %157 = vst.msk [vmem:[#allocation4] sm:$0x1] %vm156, %v155
    // Predicated region
    $region18: #{tpu_custom_call.1} parent=1 // pred_check
      %p158 = pneg %p24
    $region19: #{tpu_custom_call.1} parent=1 // pred_check_branch
      %160 = sbr.rel (%p158) target = $region21
    $region20: #{tpu_custom_call.1} parent=1 // pred_region
      %v161 = vld [vmem:[#allocation2] sm:$0xf]
      %v162 = vmul.f32 %v161, %v161
      %v163 = vsel %vm121, %v162, 0.0
      %164 = vadd.xlane.f32.xlu0 %v163
      %v165 = vpop.xlane.xlu0 %164
      %v166 = vrot.slane %v165, 4
      %v167 = vadd.f32 %v165, %v166
      %v168 = vrot.slane %v167, 2
      %v169 = vadd.f32 %v167, %v168
      %v170 = vrot.slane %v169, 1
      %v171 = vadd.f32 %v169, %v170
      %s172 = vtos %v171
      %v173 = vld [vmem:[#allocation4] sm:$0x1]
      %v174 = vstv %s172
      %v175 = vsub.f32 %v174, %v173
      %v176 = vld [vmem:[#allocation3] sm:$0xf]
      %v177 = vmul.u32 %v176, %v176
      %v178 = vsel %vm139, %v177, 0
      %v179 = vand.u32 %v178, 65535
      %v180 = vshrl.u32 %v178, 16
      %v181 = vcvt.s32.f32 %v179
      %v182 = vcvt.s32.f32 %v180
      %183 = vadd.xlane.f32.xlu0 %v181
      %v184 = vpop.xlane.xlu0 %183
      %185 = vadd.xlane.f32.xlu0 %v182
      %v186 = vpop.xlane.xlu0 %185
      %v187 = vcvt.f32.s32 %v184
      %v188 = vcvt.f32.s32 %v186
      %v189 = vshll.u32 %v188, 16
      %v190 = vadd.s32 %v189, %v187
      %v191 = vrot.slane %v190, 4
      %v192 = vadd.s32 %v190, %v191
      %v193 = vrot.slane %v192, 2
      %v194 = vadd.s32 %v192, %v193
      %v195 = vrot.slane %v194, 1
      %v196 = vadd.s32 %v194, %v195
      %s197 = vtos %v196
      %s198 = ssub.s32 %s197, 8
      %s199 = scvt.s32.f32 %s198
      %v200 = vstv %s199
      %v201 = vrcp.pop %v200
      %v202 = vmul.f32 %v175, %v201
      %203 = vst.msk [vmem:[#allocation8] sm:$0x1] %vm156, %v202
    $region21: #{tpu_custom_call.1} parent=1 // pred_fallthru
      _
    // Predicated region
    $region22: #{tpu_custom_call.1} parent=1 // pred_check
      _
    $region23: #{tpu_custom_call.1} parent=1 // pred_check_branch
      %205 = sbr.rel (0) target = $region25
    $region24: #{tpu_custom_call.1} parent=1 // pred_region
      %s207 = ssub.s32 16, 16
      %208 = vsyncadd [#allocation7], %s207
      %s210 = sshll.u32 [#allocation8], 4
      %s211 = int_to_ptr.vmem [resolvable:$true] %s210
      %213 = dma.vmem_to_hbm [thread:$0]  %s211, 16, %s2, [#allocation7]
    $region25: #{tpu_custom_call.1} parent=1 // pred_fallthru
      _
    // Predicated region
    $region26: #{tpu_custom_call.1} parent=1 // pred_check
      _
    $region27: #{tpu_custom_call.1} parent=1 // pred_check_branch
      %215 = sbr.rel (0) target = $region29
    $region28: #{tpu_custom_call.1} parent=1 // pred_region
      %216 = dma.done [#allocation7], 16
    $region29: #{tpu_custom_call.1} parent=1 // pred_fallthru
      _
    %217 = vsyncpa [#allocation6], 1
    %218 = vsyncpa [#allocation7], 1

</llo_original>
